<compile_context>
chip_gen: v5e
topology: v5e:2x2
jax: 0.10.0
libtpu: 0.0.40
codegen_flags: <defaults>
</compile_context>

<pallas_src>
import functools

import jax
import jax.numpy as jnp
from jax.experimental import pallas as pl
from jax.experimental.pallas import tpu as pltpu


def _round_up(n, m):
    return (n + m - 1) // m * m


def attention_kernel(x_ref, wv_ref, bv_ref, o_ref):
    """One grid step: a (TB, S, D_in) tile of batch rows -> (TB, D_out) outputs."""
    x = x_ref[...]                                   # (TB, S, D_in) f32
    S = x.shape[1]

    # input[:, :-1, :] without a sublane-misaligned (S-1)-row slice: mask the
    # last timestep on the full aligned block and reduce over the seq axis.
    t = jax.lax.broadcasted_iota(jnp.int32, (1, S, 1), dimension=1)
    x_keys = jnp.where(t < S - 1, x, 0.0)            # zero out last timestep
    xsum = jnp.sum(x_keys, axis=1)                   # (TB, D_in)

    # sum_{s<S-1}(x_s @ Wv + bv) == (sum_{s<S-1} x_s) @ Wv + (S-1)*bv
    v_sum = jnp.dot(xsum, wv_ref[...], preferred_element_type=jnp.float32)
    v_sum = v_sum + jnp.float32(S - 1) * bv_ref[...]  # (TB, D_out) + (1, D_out)

    # softmax over the size-1 query axis == 1.0 -> attention is the plain sum
    # above.  dropout(p=0.5): eval-mode identity.
    o_ref[...] = jnp.tanh(v_sum).astype(o_ref.dtype)


@functools.partial(jax.jit, static_argnames=("block_b",))
def attention_layer(x, wq, bq, wk, bk, wv, bv, *, block_b=128):
    """Forward pass of AttentionLayer.

    wq/bq/wk/bk are accepted for API parity with the PyTorch module but are
    mathematically dead (softmax over the size-1 query axis is identically 1),
    so they are not shipped to the kernel at all.
    """
    del wq, bq, wk, bk  # dead parameters (see module docstring)
    B, S, D_in = x.shape
    D_out = wv.shape[1]

    # Batch tile: sublane-aligned (multiple of 8), capped at block_b so the
    # per-step VMEM footprint stays modest (v5e HBM BW, v7x 64 MiB VMEM).
    TB = min(_round_up(B, 8), _round_up(block_b, 8))
    Bp = _round_up(B, TB)
    if Bp != B:
        x = jnp.pad(x, ((0, Bp - B), (0, 0), (0, 0)))

    out = pl.pallas_call(
        attention_kernel,
        out_shape=jax.ShapeDtypeStruct((Bp, D_out), jnp.float32),
        grid_spec=pltpu.PrefetchScalarGridSpec(
            num_scalar_prefetch=0,
            grid=(Bp // TB,),
            in_specs=[
                # One tile of TB batch rows; S and D_in taken whole (aligned).
                pl.BlockSpec((TB, S, D_in), lambda b: (b, 0, 0)),
                # Grid-invariant weight / bias (constant index_map -> fetched once).
                pl.BlockSpec((D_in, D_out), lambda b: (0, 0)),
                pl.BlockSpec((1, D_out), lambda b: (0, 0)),
            ],
            # Sublane/lane-dense output block: TB multiple of 8, D_out is the
            # full last dim -> unmasked stores.
            out_specs=pl.BlockSpec((TB, D_out), lambda b: (b, 0)),
        ),
        compiler_params=pltpu.CompilerParams(
            # Independent batch-tile axis: shardable across v7x's 2 TensorCores.
            dimension_semantics=("parallel",),
        ),
    )(x, wv, bv)

    return out[:B]


def reference(x, wq, bq, wk, bk, wv, bv):
    # Pure-JAX reference of the (bug-)faithful module semantics.
    q = x[:, -1, :] @ wq + bq[0]                      # (B, D_out)
    k = x[:, :-1, :] @ wk + bk[0]                     # (B, S-1, D_out)
    v = x[:, :-1, :] @ wv + bv[0]                     # (B, S-1, D_out)
    qkt = jnp.einsum("bd,bkd->bk", q, k)[:, None, :]  # (B, 1, S-1)
    attn = jax.nn.softmax(qkt, axis=1)                # softmax over dim=1 (size 1)
    qktv = jnp.einsum("bok,bkd->bod", attn, v)        # (B, 1, D_out)
    out = jnp.tanh(jnp.sum(qktv, axis=1))             # (B, D_out)
    return out


if __name__ == "__main__":
    B, S, D_in, D_out = 2, 8, 32, 32

    key = jax.random.PRNGKey(0)
    kx, kq, kbq, kk, kbk, kv, kbv = jax.random.split(key, 7)

    x = jax.random.normal(kx, (B, S, D_in), dtype=jnp.float32)
    scale = 1.0 / jnp.sqrt(jnp.float32(D_in))
    wq = jax.random.uniform(kq, (D_in, D_out), jnp.float32, -scale, scale)
    bq = jax.random.uniform(kbq, (1, D_out), jnp.float32, -scale, scale)
    wk = jax.random.uniform(kk, (D_in, D_out), jnp.float32, -scale, scale)
    bk = jax.random.uniform(kbk, (1, D_out), jnp.float32, -scale, scale)
    wv = jax.random.uniform(kv, (D_in, D_out), jnp.float32, -scale, scale)
    bv = jax.random.uniform(kbv, (1, D_out), jnp.float32, -scale, scale)

    out = attention_layer(x, wq, bq, wk, bk, wv, bv)
    out = jax.block_until_ready(out)
    ref = reference(x, wq, bq, wk, bk, wv, bv)
    assert out.shape == (B, D_out)
    assert jnp.allclose(out, ref, atol=1e-5, rtol=1e-5), "mismatch vs JAX reference"

    # Second config: exercises batch tiling + padding (B not a multiple of TB,
    # multi-step grid).
    x2 = jax.random.normal(jax.random.PRNGKey(1), (20, S, D_in), dtype=jnp.float32)
    out2 = jax.block_until_ready(
        attention_layer(x2, wq, bq, wk, bk, wv, bv, block_b=8))
    ref2 = reference(x2, wq, bq, wk, bk, wv, bv)
    assert out2.shape == (20, D_out)
    assert jnp.allclose(out2, ref2, atol=1e-5, rtol=1e-5), "mismatch vs JAX reference (tiled)"

    print("KERNEL_OK")
</pallas_src>

<mosaic_0001>
module attributes {stable_mosaic.version = 11 : i64} {
  func.func @attention_kernel(%arg0: i32, %arg1: memref<8x8x32xf32, #tpu.memory_space<vmem>>, %arg2: memref<32x32xf32, #tpu.memory_space<vmem>>, %arg3: memref<1x32xf32, #tpu.memory_space<vmem>>, %arg4: memref<8x32xf32, #tpu.memory_space<vmem>>) attributes {dimension_semantics = [#tpu.dimension_semantics<parallel>], iteration_bounds = array<i64: 1>, scalar_prefetch = 0 : i64, scratch_operands = 0 : i64, tpu.core_type = #tpu.core_type<tc>, window_params = [{transform_indices = @transform_0, window_bounds = array<i64: 8, 8, 32>}, {pipeline_mode = #tpu.pipeline_mode<synchronous>, transform_indices = @transform_1, window_bounds = array<i64: 32, 32>}, {pipeline_mode = #tpu.pipeline_mode<synchronous>, transform_indices = @transform_2, window_bounds = array<i64: 1, 32>}, {transform_indices = @transform_3, window_bounds = array<i64: 8, 32>}]} {
    %c0 = arith.constant 0 : index
    %c0_0 = arith.constant 0 : index
    %c0_1 = arith.constant 0 : index
    %0 = vector.load %arg1[%c0, %c0_0, %c0_1] : memref<8x8x32xf32, #tpu.memory_space<vmem>>, vector<8x8x32xf32>
    %1 = tpu.iota {dimensions = array<i32: 1>} : vector<1x8x1xi32>
    %c7_i32 = arith.constant 7 : i32
    %2 = vector.broadcast %c7_i32 : i32 to vector<1x8x1xi32>
    %3 = arith.cmpi slt, %1, %2 : vector<1x8x1xi32>
    %cst = arith.constant 0.000000e+00 : f32
    %4 = vector.shape_cast %3 : vector<1x8x1xi1> to vector<1x8x1xi1>
    %5 = vector.broadcast %4 : vector<1x8x1xi1> to vector<8x8x32xi1>
    %6 = vector.broadcast %cst : f32 to vector<8x8x32xf32>
    %7 = arith.select %5, %0, %6 : vector<8x8x32xi1>, vector<8x8x32xf32>
    %cst_2 = arith.constant dense<0.000000e+00> : vector<8x32xf32>
    %8 = vector.multi_reduction <add>, %7, %cst_2 [1] : vector<8x8x32xf32> to vector<8x32xf32>
    %c0_3 = arith.constant 0 : index
    %c0_4 = arith.constant 0 : index
    %9 = vector.load %arg2[%c0_3, %c0_4] : memref<32x32xf32, #tpu.memory_space<vmem>>, vector<32x32xf32>
    %cst_5 = arith.constant dense<0.000000e+00> : vector<8x32xf32>
    %10 = tpu.matmul %8, %9, %cst_5 {dimension_numbers = #tpu.dot_dimension_numbers<[1], [0], [0], [1], [0, 0, 1, 1], [], []>} : vector<8x32xf32>, vector<32x32xf32>, vector<8x32xf32> -> vector<8x32xf32>
    %c0_6 = arith.constant 0 : index
    %c0_7 = arith.constant 0 : index
    %11 = vector.load %arg3[%c0_6, %c0_7] : memref<1x32xf32, #tpu.memory_space<vmem>>, vector<1x32xf32>
    %cst_8 = arith.constant 7.000000e+00 : f32
    %12 = vector.broadcast %cst_8 : f32 to vector<1x32xf32>
    %13 = arith.mulf %12, %11 : vector<1x32xf32>
    %14 = vector.broadcast %13 : vector<1x32xf32> to vector<8x32xf32>
    %15 = arith.addf %10, %14 : vector<8x32xf32>
    %16 = math.tanh %15 : vector<8x32xf32>
    %c0_9 = arith.constant 0 : index
    %c0_10 = arith.constant 0 : index
    %17 = vector.load %arg4[%c0_9, %c0_10] : memref<8x32xf32, #tpu.memory_space<vmem>>, vector<8x32xf32>
    tpu.vector_store %arg4[%c0_9, %c0_10], %16 {strides = array<i32>} : memref<8x32xf32, #tpu.memory_space<vmem>>, vector<8x32xf32>,
    return
  }
  func.func @transform_0(%arg0: i32) -> (i32, i32, i32) {
    %c0_i32 = arith.constant 0 : i32
    %c0_i32_0 = arith.constant 0 : i32
    %c0_i32_1 = arith.constant 0 : i32
    return %arg0, %c0_i32, %c0_i32_0 : i32, i32, i32
  }
  func.func @transform_1(%arg0: i32) -> (i32, i32) {
    %c0_i32 = arith.constant 0 : i32
    %c0_i32_0 = arith.constant 0 : i32
    %c0_i32_1 = arith.constant 0 : i32
    return %c0_i32, %c0_i32_0 : i32, i32
  }
  func.func @transform_2(%arg0: i32) -> (i32, i32) {
    %c0_i32 = arith.constant 0 : i32
    %c0_i32_0 = arith.constant 0 : i32
    %c0_i32_1 = arith.constant 0 : i32
    return %c0_i32, %c0_i32_0 : i32, i32
  }
  func.func @transform_3(%arg0: i32) -> (i32, i32) {
    %c0_i32 = arith.constant 0 : i32
    %c0_i32_0 = arith.constant 0 : i32
    return %arg0, %c0_i32 : i32, i32
  }
}

</mosaic_0001>

<llo_original>
// kernel: attention_layer.1
$region0: #{attention_layer.1}
  #allocation0 [shape = 'u32[]', space=smem, size = 0x4, offset = 0x4, fixed_abs, tag = 'smem constant byte address 0x4 - core index']
  #allocation1 [shape = 'u32[72,128]{1,0:T(1,128)}', space=vmem, size = 0x9000, scoped, tag = 'internal scratch']
  %s0 = inlined_call_operand.vmem [shape: f32[8,8,32], index: 0, kind: input, shape index: {}]
  %s1 = inlined_call_operand.vmem [shape: f32[32,32], index: 1, kind: input, shape index: {}]
  %s2 = inlined_call_operand.vmem [shape: f32[1,32], index: 2, kind: input, shape index: {}]
  %s3 = inlined_call_operand.vmem [shape: f32[8,32], index: 3, kind: output, shape index: {}]
  %s4 = sld [smem:[#allocation0]]
  $region22: #{attention_layer.1} parent=0
    _
  %s6 = ssub.s32 1, %s4
  %s7 = scalar_select 0, %s6, %s4
  // Predicated region
  $region2: #{attention_layer.1} parent=0 // pred_check
    _
  $region3: #{attention_layer.1} parent=0 // pred_check_branch
    %9 = sbr.rel (0) target = $region5
  $region4: #{attention_layer.1} parent=0 // pred_region
    _
  $region5: #{attention_layer.1} parent=0 // pred_fallthru
    _
  // Predicated region
  $region6: #{attention_layer.1} parent=0 // pred_check
    _
  $region7: #{attention_layer.1} parent=0 // pred_check_branch
    %11 = sbr.rel (0) target = $region9
  $region8: #{attention_layer.1} parent=0 // pred_region
    _
  $region9: #{attention_layer.1} parent=0 // pred_fallthru
    _
  // Predicated region
  $region10: #{attention_layer.1} parent=0 // pred_check
    _
  $region11: #{attention_layer.1} parent=0 // pred_check_branch
    %13 = sbr.rel (0) target = $region13
  $region12: #{attention_layer.1} parent=0 // pred_region
    _
  $region13: #{attention_layer.1} parent=0 // pred_fallthru
    _
  %v14 = vld [vmem:[%s0] sm:$0xff]
  %v15 = vld [vmem:[%s0 + $0x8] sm:$0xff]
  %v16 = vld [vmem:[%s0 + $0x10] sm:$0xff]
  %v17 = vld [vmem:[%s0 + $0x18] sm:$0xff]
  %v18 = vld [vmem:[%s0 + $0x20] sm:$0xff]
  %v19 = vld [vmem:[%s0 + $0x28] sm:$0xff]
  %v20 = vld [vmem:[%s0 + $0x30] sm:$0xff]
  %v21 = vld [vmem:[%s0 + $0x38] sm:$0xff]
  %v22 = vlaneseq
  %v23 = vshrl.u32 %v22, 7
  %vm24 = vcmp.lt.s32.totalorder %v23, 7
  %v25 = vsel %vm24, 1, 0
  %vm26 = vcmp.eq.s32.totalorder %v25, 1
  %v27 = vsel %vm26, %v14, 0.0
  %v28 = vsel %vm26, %v15, 0.0
  %v29 = vsel %vm26, %v16, 0.0
  %v30 = vsel %vm26, %v17, 0.0
  %v31 = vsel %vm26, %v18, 0.0
  %v32 = vsel %vm26, %v19, 0.0
  %v33 = vsel %vm26, %v20, 0.0
  %v34 = vsel %vm26, %v21, 0.0
  %vm35 = vcmask 261120
  %v36 = vsel %vm35, %v27, 0.0
  %v37 = vrot.slane %v36, 4
  %v38 = vadd.f32 %v36, %v37
  %v39 = vrot.slane %v38, 2
  %v40 = vadd.f32 %v38, %v39
  %v41 = vrot.slane %v40, 1
  %v42 = vadd.f32 %v40, %v41
  %v43 = vsel %vm35, %v28, 0.0
  %v44 = vrot.slane %v43, 4
  %v45 = vadd.f32 %v43, %v44
  %v46 = vrot.slane %v45, 2
  %v47 = vadd.f32 %v45, %v46
  %v48 = vrot.slane %v47, 1
  %v49 = vadd.f32 %v47, %v48
  %v50 = vsel %vm35, %v29, 0.0
  %v51 = vrot.slane %v50, 4
  %v52 = vadd.f32 %v50, %v51
  %v53 = vrot.slane %v52, 2
  %v54 = vadd.f32 %v52, %v53
  %v55 = vrot.slane %v54, 1
  %v56 = vadd.f32 %v54, %v55
  %v57 = vsel %vm35, %v30, 0.0
  %v58 = vrot.slane %v57, 4
  %v59 = vadd.f32 %v57, %v58
  %v60 = vrot.slane %v59, 2
  %v61 = vadd.f32 %v59, %v60
  %v62 = vrot.slane %v61, 1
  %v63 = vadd.f32 %v61, %v62
  %v64 = vsel %vm35, %v31, 0.0
  %v65 = vrot.slane %v64, 4
  %v66 = vadd.f32 %v64, %v65
  %v67 = vrot.slane %v66, 2
  %v68 = vadd.f32 %v66, %v67
  %v69 = vrot.slane %v68, 1
  %v70 = vadd.f32 %v68, %v69
  %v71 = vsel %vm35, %v32, 0.0
  %v72 = vrot.slane %v71, 4
  %v73 = vadd.f32 %v71, %v72
  %v74 = vrot.slane %v73, 2
  %v75 = vadd.f32 %v73, %v74
  %v76 = vrot.slane %v75, 1
  %v77 = vadd.f32 %v75, %v76
  %v78 = vsel %vm35, %v33, 0.0
  %v79 = vrot.slane %v78, 4
  %v80 = vadd.f32 %v78, %v79
  %v81 = vrot.slane %v80, 2
  %v82 = vadd.f32 %v80, %v81
  %v83 = vrot.slane %v82, 1
  %v84 = vadd.f32 %v82, %v83
  %v85 = vsel %vm35, %v34, 0.0
  %v86 = vrot.slane %v85, 4
  %v87 = vadd.f32 %v85, %v86
  %v88 = vrot.slane %v87, 2
  %v89 = vadd.f32 %v87, %v88
  %v90 = vrot.slane %v89, 1
  %v91 = vadd.f32 %v89, %v90
  %v92 = vld [vmem:[%s1] sm:$0xff]
  %v93 = vld [vmem:[%s1 + $0x8] sm:$0xff]
  %v94 = vld [vmem:[%s1 + $0x10] sm:$0xff]
  %v95 = vld [vmem:[%s1 + $0x18] sm:$0xff]
  %v96 = vld [vmem:[%s2] sm:$0x1]
  %v97 = vmul.f32 %v96, 7.0
  %v99 = vperm.slane %v97, 0
  %vm109 = vcmask 1041409
  %v110 = vsel %vm109, %v49, %v42
  %vm111 = vcmask 1042434
  %v112 = vsel %vm111, %v56, %v110
  %vm113 = vcmask 1043459
  %v114 = vsel %vm113, %v63, %v112
  %vm115 = vcmask 1044484
  %v116 = vsel %vm115, %v70, %v114
  %vm117 = vcmask 1045509
  %v118 = vsel %vm117, %v77, %v116
  %vm119 = vcmask 1046534
  %v120 = vsel %vm119, %v84, %v118
  %vm121 = vcmask 1047559
  %v122 = vsel %vm121, %v91, %v120
  %v123 = vsel %vm35, %v122, 0
  %125 = vmatpush.msra.mxu0 0.0
  %126 = vmatpush.msra.mxu0 0.0
  %127 = vmatpush.msra.mxu0 0.0
  %128 = vmatpush.msra.mxu0 0.0
  %129 = vmatpush.msra.mxu0 0.0
  %130 = vmatpush.msra.mxu0 0.0
  %131 = vmatpush.msra.mxu0 0.0
  %132 = vmatpush.msra.mxu0 0.0
  %133 = vmatpush.msra.mxu0 0.0
  %134 = vmatpush.msra.mxu0 0.0
  %135 = vmatpush.msra.mxu0 0.0
  %136 = vmatpush.msra.mxu0 0.0
  %137 = vmatpush.msra.mxu0 %v95
  %138 = vmatpush.msra.mxu0 %v94
  %139 = vmatpush.msra.mxu0 %v93
  %140 = vmatpush.msra.mxu0 %v92
  %141 = vmatmul.f32.gmra.mxu0 %v123
  %v142 = vpop.f32.mrf.mxu0
  %v143 = vadd.f32 %v99, %v142
  %144 = vdwg.mxu0
  %v145 = vtanh.pop %v143
  %146 = vst.msk [vmem:[%s3] sm:$0xff] %vm35, %v145
  // Predicated region
  $region14: #{attention_layer.1} parent=0 // pred_check
    _
  $region15: #{attention_layer.1} parent=0 // pred_check_branch
    %148 = sbr.rel (0) target = $region17
  $region16: #{attention_layer.1} parent=0 // pred_region
    _
  $region17: #{attention_layer.1} parent=0 // pred_fallthru
    _
  // Predicated region
  $region18: #{attention_layer.1} parent=0 // pred_check
    _
  $region19: #{attention_layer.1} parent=0 // pred_check_branch
    %150 = sbr.rel (0) target = $region21
  $region20: #{attention_layer.1} parent=0 // pred_region
    _
  $region21: #{attention_layer.1} parent=0 // pred_fallthru
    _

</llo_original>
